<compile_context>
chip_gen: v7x
topology: tpu7x:2x2x1
jax: 0.10.0
libtpu: 0.0.40
codegen_flags: <defaults>
</compile_context>

<pallas_src>
from functools import partial

import jax
import jax.numpy as jnp
from jax.experimental import pallas as pl
from jax.experimental.pallas import tpu as pltpu


def _round_up(n, m):
    return (n + m - 1) // m * m


def _pick_tile(batch, batch_tile):
    """Pick a batch tile: big tiles for big batches, >=2 programs when possible."""
    if batch >= 2 * batch_tile:
        return batch_tile                      # large batch: full tiles (mult. of 128)
    if batch > 8:
        # Split into (at least) two programs so dimension_semantics=("parallel",)
        # can shard across both TensorCores on v7x.
        align = 128 if batch > 256 else 8
        return _round_up(pl.cdiv(batch, 2), align)
    return _round_up(batch, 8)


def _generator_kernel(x_ref, eps_ref,
                      w1_ref, b1_ref,          # fc1
                      w2c_ref, b2c_ref,        # fused fc21 | fc22
                      w3_ref, b3_ref,          # fc3
                      w4_ref, b4_ref,          # fc4
                      recon_ref, mu_ref, logvar_ref):
    latent_dim = mu_ref.shape[-1]

    # bf16 matmul operands, f32 accumulation; activations stay f32.
    x = x_ref[...].astype(jnp.bfloat16)

    # ---- encode: fc1 -> tanh, fused fc21|fc22 ----
    h1 = jnp.tanh(
        jnp.dot(x, w1_ref[...], preferred_element_type=jnp.float32) + b1_ref[...])
    mulv = jnp.dot(h1.astype(jnp.bfloat16), w2c_ref[...],
                   preferred_element_type=jnp.float32) + b2c_ref[...]
    mu = mulv[:, :latent_dim]
    logvar = mulv[:, latent_dim:]

    # ---- reparameterize: z = mu + eps * exp(0.5 * logvar) ----
    z = mu + eps_ref[...].astype(jnp.float32) * jnp.exp(0.5 * logvar)

    # ---- decode: fc3 -> tanh -> fc4 -> sigmoid ----
    h3 = jnp.tanh(
        jnp.dot(z.astype(jnp.bfloat16), w3_ref[...],
                preferred_element_type=jnp.float32) + b3_ref[...])
    logits = jnp.dot(h3.astype(jnp.bfloat16), w4_ref[...],
                     preferred_element_type=jnp.float32) + b4_ref[...]

    # ---- direct stores, no repack ----
    recon_ref[...] = jax.nn.sigmoid(logits).astype(recon_ref.dtype)
    mu_ref[...] = mu.astype(mu_ref.dtype)
    logvar_ref[...] = logvar.astype(logvar_ref.dtype)


def init_linear_params(key, in_features, out_features):
    """PyTorch-style nn.Linear init: U(-1/sqrt(fan_in), 1/sqrt(fan_in))."""
    kw, kb = jax.random.split(key)
    bound = 1.0 / jnp.sqrt(jnp.float32(in_features))
    w = jax.random.uniform(kw, (in_features, out_features), jnp.float32, -bound, bound)
    b = jax.random.uniform(kb, (1, out_features), jnp.float32, -bound, bound)
    return w, b


def prepare_generator_params(params):
    """One-time prep: fuse fc21|fc22 and cast matmul weights to bf16 (hoisted
    out of the per-call forward so it is not repeated every step)."""
    (w1, b1), (w21, b21), (w22, b22), (w3, b3), (w4, b4) = params
    w2c = jnp.concatenate([w21, w22], axis=1)
    b2c = jnp.concatenate([b21, b22], axis=1)
    bf = lambda w: w.astype(jnp.bfloat16)
    f32 = lambda b: b.astype(jnp.float32)
    return (bf(w1), f32(b1), bf(w2c), f32(b2c), bf(w3), f32(b3), bf(w4), f32(b4))


@partial(jax.jit, static_argnames=("batch_tile", "out_dtype"))
def generator_forward(x, prepared, key, *, batch_tile=1024, out_dtype=jnp.bfloat16):
    """Forward pass of the Generator; x is flattened to (-1, input_dim).

    Returns (recon, mu, logvar) like the PyTorch module.  eps ~ N(0, 1) is
    drawn from `key` (the equivalent of torch.randn_like) and fed to the
    kernel as an input.
    """
    w1b, b1, w2cb, b2c, w3b, b3, w4b, b4 = prepared
    input_dim = w1b.shape[0]
    latent_dim = w3b.shape[0]

    x2d = x.reshape(-1, input_dim).astype(jnp.float32)   # cast to bf16 in-kernel
    batch = x2d.shape[0]
    eps = jax.random.normal(key, (batch, latent_dim), jnp.float32)

    tb = _pick_tile(batch, batch_tile)
    grid = (pl.cdiv(batch, tb),)

    def row_spec(feat):
        return pl.BlockSpec((tb, feat), lambda i: (i, 0))

    def const_spec(shape):
        return pl.BlockSpec(shape, lambda i: (0, 0))

    recon, mu, logvar = pl.pallas_call(
        _generator_kernel,
        out_shape=(
            jax.ShapeDtypeStruct((batch, input_dim), out_dtype),
            jax.ShapeDtypeStruct((batch, latent_dim), out_dtype),
            jax.ShapeDtypeStruct((batch, latent_dim), out_dtype),
        ),
        grid=grid,
        in_specs=[
            row_spec(input_dim),                  # x
            row_spec(latent_dim),                 # eps
            const_spec(w1b.shape), const_spec(b1.shape),
            const_spec(w2cb.shape), const_spec(b2c.shape),
            const_spec(w3b.shape), const_spec(b3.shape),
            const_spec(w4b.shape), const_spec(b4.shape),
        ],
        out_specs=(row_spec(input_dim), row_spec(latent_dim), row_spec(latent_dim)),
        compiler_params=pltpu.CompilerParams(
            dimension_semantics=("parallel",),
            vmem_limit_bytes=48 * 1024 * 1024,    # safe on v7x (64 MiB), roomy on v5e/v6e
        ),
    )(x2d, eps, w1b, b1, w2cb, b2c, w3b, b3, w4b, b4)

    return recon, mu, logvar


if __name__ == "__main__":
    # Lane-friendly sizes: input_dim=128, hidden_dim=128, latent_dim=64.
    input_dim, hidden_dim, latent_dim = 128, 128, 64

    key = jax.random.PRNGKey(0)
    k_x, k_eps, k1, k21, k22, k3, k4 = jax.random.split(key, 7)

    params = (
        init_linear_params(k1, input_dim, hidden_dim),    # fc1
        init_linear_params(k21, hidden_dim, latent_dim),  # fc21
        init_linear_params(k22, hidden_dim, latent_dim),  # fc22
        init_linear_params(k3, latent_dim, hidden_dim),   # fc3
        init_linear_params(k4, hidden_dim, input_dim),    # fc4
    )
    prepared = prepare_generator_params(params)

    # Image-like batch; forward flattens to (-1, input_dim): 2*4*16*16 / 128 = 16 rows.
    x = jax.random.normal(k_x, (2, 4, 16, 16), jnp.float32)
    batch = x.size // input_dim

    recon, mu, logvar = generator_forward(x, prepared, k_eps)
    jax.block_until_ready((recon, mu, logvar))

    # ---- sanity checks against a pure-JAX reference (same bf16 operand casts,
    # same eps draw: identical key/shape/dtype) ----
    (w1, b1), (w21, b21), (w22, b22), (w3, b3), (w4, b4) = params
    w2c = jnp.concatenate([w21, w22], axis=1)
    b2c = jnp.concatenate([b21, b22], axis=1)
    eps_ref = jax.random.normal(k_eps, (batch, latent_dim), jnp.float32)
    bf = lambda a: a.astype(jnp.bfloat16)

    x2d = x.reshape(-1, input_dim).astype(jnp.float32)
    h1_r = jnp.tanh(jnp.dot(bf(x2d), bf(w1), preferred_element_type=jnp.float32) + b1)
    mulv_r = jnp.dot(bf(h1_r), bf(w2c), preferred_element_type=jnp.float32) + b2c
    mu_r, lv_r = mulv_r[:, :latent_dim], mulv_r[:, latent_dim:]
    z_r = mu_r + eps_ref * jnp.exp(0.5 * lv_r)
    h3_r = jnp.tanh(jnp.dot(bf(z_r), bf(w3), preferred_element_type=jnp.float32) + b3)
    recon_r = jax.nn.sigmoid(
        jnp.dot(bf(h3_r), bf(w4), preferred_element_type=jnp.float32) + b4)

    assert recon.shape == (batch, input_dim)
    assert mu.shape == (batch, latent_dim) and logvar.shape == (batch, latent_dim)
    assert float(jnp.max(jnp.abs(mu.astype(jnp.float32) - mu_r))) < 5e-2
    assert float(jnp.max(jnp.abs(logvar.astype(jnp.float32) - lv_r))) < 5e-2
    assert float(jnp.max(jnp.abs(recon.astype(jnp.float32) - recon_r))) < 5e-2
    assert bool(jnp.all(jnp.isfinite(recon.astype(jnp.float32))))
    assert bool(jnp.all((recon >= 0.0) & (recon <= 1.0)))

    print("KERNEL_OK")
</pallas_src>

<mosaic_0001>
module attributes {stable_mosaic.version = 11 : i64} {
  func.func @_generator_kernel(%arg0: i32, %arg1: memref<8x128xf32, #tpu.memory_space<vmem>>, %arg2: memref<8x64xf32, #tpu.memory_space<vmem>>, %arg3: memref<128x128xbf16, #tpu.memory_space<vmem>>, %arg4: memref<1x128xf32, #tpu.memory_space<vmem>>, %arg5: memref<128x128xbf16, #tpu.memory_space<vmem>>, %arg6: memref<1x128xf32, #tpu.memory_space<vmem>>, %arg7: memref<64x128xbf16, #tpu.memory_space<vmem>>, %arg8: memref<1x128xf32, #tpu.memory_space<vmem>>, %arg9: memref<128x128xbf16, #tpu.memory_space<vmem>>, %arg10: memref<1x128xf32, #tpu.memory_space<vmem>>, %arg11: memref<8x128xbf16, #tpu.memory_space<vmem>>, %arg12: memref<8x64xbf16, #tpu.memory_space<vmem>>, %arg13: memref<8x64xbf16, #tpu.memory_space<vmem>>) attributes {dimension_semantics = [#tpu.dimension_semantics<parallel>], iteration_bounds = array<i64: 2>, scalar_prefetch = 0 : i64, scratch_operands = 0 : i64, tpu.core_type = #tpu.core_type<tc>, window_params = [{transform_indices = @transform_0, window_bounds = array<i64: 8, 128>}, {transform_indices = @transform_1, window_bounds = array<i64: 8, 64>}, {pipeline_mode = #tpu.pipeline_mode<synchronous>, transform_indices = @transform_2, window_bounds = array<i64: 128, 128>}, {pipeline_mode = #tpu.pipeline_mode<synchronous>, transform_indices = @transform_3, window_bounds = array<i64: 1, 128>}, {pipeline_mode = #tpu.pipeline_mode<synchronous>, transform_indices = @transform_4, window_bounds = array<i64: 128, 128>}, {pipeline_mode = #tpu.pipeline_mode<synchronous>, transform_indices = @transform_5, window_bounds = array<i64: 1, 128>}, {pipeline_mode = #tpu.pipeline_mode<synchronous>, transform_indices = @transform_6, window_bounds = array<i64: 64, 128>}, {pipeline_mode = #tpu.pipeline_mode<synchronous>, transform_indices = @transform_7, window_bounds = array<i64: 1, 128>}, {pipeline_mode = #tpu.pipeline_mode<synchronous>, transform_indices = @transform_8, window_bounds = array<i64: 128, 128>}, {pipeline_mode = #tpu.pipeline_mode<synchronous>, transform_indices = @transform_9, window_bounds = array<i64: 1, 128>}, {transform_indices = @transform_10, window_bounds = array<i64: 8, 128>}, {transform_indices = @transform_11, window_bounds = array<i64: 8, 64>}, {transform_indices = @transform_12, window_bounds = array<i64: 8, 64>}]} {
    %c0 = arith.constant 0 : index
    %c0_0 = arith.constant 0 : index
    %0 = vector.load %arg1[%c0, %c0_0] : memref<8x128xf32, #tpu.memory_space<vmem>>, vector<8x128xf32>
    %1 = arith.truncf %0 : vector<8x128xf32> to vector<8x128xbf16>
    %c0_1 = arith.constant 0 : index
    %c0_2 = arith.constant 0 : index
    %2 = vector.load %arg3[%c0_1, %c0_2] : memref<128x128xbf16, #tpu.memory_space<vmem>>, vector<128x128xbf16>
    %cst = arith.constant dense<0.000000e+00> : vector<8x128xf32>
    %3 = tpu.matmul %1, %2, %cst {dimension_numbers = #tpu.dot_dimension_numbers<[1], [0], [0], [1], [0, 0, 1, 1], [], []>} : vector<8x128xbf16>, vector<128x128xbf16>, vector<8x128xf32> -> vector<8x128xf32>
    %c0_3 = arith.constant 0 : index
    %c0_4 = arith.constant 0 : index
    %4 = vector.load %arg4[%c0_3, %c0_4] : memref<1x128xf32, #tpu.memory_space<vmem>>, vector<1x128xf32>
    %5 = vector.broadcast %4 : vector<1x128xf32> to vector<8x128xf32>
    %6 = arith.addf %3, %5 : vector<8x128xf32>
    %7 = math.tanh %6 : vector<8x128xf32>
    %8 = arith.truncf %7 : vector<8x128xf32> to vector<8x128xbf16>
    %c0_5 = arith.constant 0 : index
    %c0_6 = arith.constant 0 : index
    %9 = vector.load %arg5[%c0_5, %c0_6] : memref<128x128xbf16, #tpu.memory_space<vmem>>, vector<128x128xbf16>
    %cst_7 = arith.constant dense<0.000000e+00> : vector<8x128xf32>
    %10 = tpu.matmul %8, %9, %cst_7 {dimension_numbers = #tpu.dot_dimension_numbers<[1], [0], [0], [1], [0, 0, 1, 1], [], []>} : vector<8x128xbf16>, vector<128x128xbf16>, vector<8x128xf32> -> vector<8x128xf32>
    %c0_8 = arith.constant 0 : index
    %c0_9 = arith.constant 0 : index
    %11 = vector.load %arg6[%c0_8, %c0_9] : memref<1x128xf32, #tpu.memory_space<vmem>>, vector<1x128xf32>
    %12 = vector.broadcast %11 : vector<1x128xf32> to vector<8x128xf32>
    %13 = arith.addf %10, %12 : vector<8x128xf32>
    %14 = vector.extract_strided_slice %13 {offsets = [0, 0], sizes = [8, 64], strides = [1, 1]} : vector<8x128xf32> to vector<8x64xf32>
    %15 = vector.extract_strided_slice %13 {offsets = [0, 64], sizes = [8, 64], strides = [1, 1]} : vector<8x128xf32> to vector<8x64xf32>
    %c0_10 = arith.constant 0 : index
    %c0_11 = arith.constant 0 : index
    %16 = vector.load %arg2[%c0_10, %c0_11] : memref<8x64xf32, #tpu.memory_space<vmem>>, vector<8x64xf32>
    %cst_12 = arith.constant 5.000000e-01 : f32
    %17 = vector.broadcast %cst_12 : f32 to vector<8x64xf32>
    %18 = arith.mulf %17, %15 : vector<8x64xf32>
    %19 = math.exp %18 : vector<8x64xf32>
    %20 = arith.mulf %16, %19 : vector<8x64xf32>
    %21 = arith.addf %14, %20 : vector<8x64xf32>
    %22 = arith.truncf %21 : vector<8x64xf32> to vector<8x64xbf16>
    %c0_13 = arith.constant 0 : index
    %c0_14 = arith.constant 0 : index
    %23 = vector.load %arg7[%c0_13, %c0_14] : memref<64x128xbf16, #tpu.memory_space<vmem>>, vector<64x128xbf16>
    %cst_15 = arith.constant dense<0.000000e+00> : vector<8x128xf32>
    %24 = tpu.matmul %22, %23, %cst_15 {dimension_numbers = #tpu.dot_dimension_numbers<[1], [0], [0], [1], [0, 0, 1, 1], [], []>} : vector<8x64xbf16>, vector<64x128xbf16>, vector<8x128xf32> -> vector<8x128xf32>
    %c0_16 = arith.constant 0 : index
    %c0_17 = arith.constant 0 : index
    %25 = vector.load %arg8[%c0_16, %c0_17] : memref<1x128xf32, #tpu.memory_space<vmem>>, vector<1x128xf32>
    %26 = vector.broadcast %25 : vector<1x128xf32> to vector<8x128xf32>
    %27 = arith.addf %24, %26 : vector<8x128xf32>
    %28 = math.tanh %27 : vector<8x128xf32>
    %29 = arith.truncf %28 : vector<8x128xf32> to vector<8x128xbf16>
    %c0_18 = arith.constant 0 : index
    %c0_19 = arith.constant 0 : index
    %30 = vector.load %arg9[%c0_18, %c0_19] : memref<128x128xbf16, #tpu.memory_space<vmem>>, vector<128x128xbf16>
    %cst_20 = arith.constant dense<0.000000e+00> : vector<8x128xf32>
    %31 = tpu.matmul %29, %30, %cst_20 {dimension_numbers = #tpu.dot_dimension_numbers<[1], [0], [0], [1], [0, 0, 1, 1], [], []>} : vector<8x128xbf16>, vector<128x128xbf16>, vector<8x128xf32> -> vector<8x128xf32>
    %c0_21 = arith.constant 0 : index
    %c0_22 = arith.constant 0 : index
    %32 = vector.load %arg10[%c0_21, %c0_22] : memref<1x128xf32, #tpu.memory_space<vmem>>, vector<1x128xf32>
    %33 = vector.broadcast %32 : vector<1x128xf32> to vector<8x128xf32>
    %34 = arith.addf %31, %33 : vector<8x128xf32>
    %35 = arith.negf %34 : vector<8x128xf32>
    %36 = math.exp %35 : vector<8x128xf32>
    %cst_23 = arith.constant 1.000000e+00 : f32
    %37 = vector.broadcast %cst_23 : f32 to vector<8x128xf32>
    %38 = arith.addf %37, %36 : vector<8x128xf32>
    %39 = arith.divf %37, %38 : vector<8x128xf32>
    %40 = arith.truncf %39 : vector<8x128xf32> to vector<8x128xbf16>
    %c0_24 = arith.constant 0 : index
    %c0_25 = arith.constant 0 : index
    %41 = vector.load %arg11[%c0_24, %c0_25] : memref<8x128xbf16, #tpu.memory_space<vmem>>, vector<8x128xbf16>
    tpu.vector_store %arg11[%c0_24, %c0_25], %40 {strides = array<i32>} : memref<8x128xbf16, #tpu.memory_space<vmem>>, vector<8x128xbf16>,
    %42 = arith.truncf %14 : vector<8x64xf32> to vector<8x64xbf16>
    %c0_26 = arith.constant 0 : index
    %c0_27 = arith.constant 0 : index
    %43 = vector.load %arg12[%c0_26, %c0_27] : memref<8x64xbf16, #tpu.memory_space<vmem>>, vector<8x64xbf16>
    tpu.vector_store %arg12[%c0_26, %c0_27], %42 {strides = array<i32>} : memref<8x64xbf16, #tpu.memory_space<vmem>>, vector<8x64xbf16>,
    %44 = arith.truncf %15 : vector<8x64xf32> to vector<8x64xbf16>
    %c0_28 = arith.constant 0 : index
    %c0_29 = arith.constant 0 : index
    %45 = vector.load %arg13[%c0_28, %c0_29] : memref<8x64xbf16, #tpu.memory_space<vmem>>, vector<8x64xbf16>
    tpu.vector_store %arg13[%c0_28, %c0_29], %44 {strides = array<i32>} : memref<8x64xbf16, #tpu.memory_space<vmem>>, vector<8x64xbf16>,
    return
  }
  func.func @transform_0(%arg0: i32) -> (i32, i32) {
    %c0_i32 = arith.constant 0 : i32
    %c0_i32_0 = arith.constant 0 : i32
    return %arg0, %c0_i32 : i32, i32
  }
  func.func @transform_1(%arg0: i32) -> (i32, i32) {
    %c0_i32 = arith.constant 0 : i32
    %c0_i32_0 = arith.constant 0 : i32
    return %arg0, %c0_i32 : i32, i32
  }
  func.func @transform_2(%arg0: i32) -> (i32, i32) {
    %c0_i32 = arith.constant 0 : i32
    %c0_i32_0 = arith.constant 0 : i32
    %c0_i32_1 = arith.constant 0 : i32
    return %c0_i32, %c0_i32_0 : i32, i32
  }
  func.func @transform_3(%arg0: i32) -> (i32, i32) {
    %c0_i32 = arith.constant 0 : i32
    %c0_i32_0 = arith.constant 0 : i32
    %c0_i32_1 = arith.constant 0 : i32
    return %c0_i32, %c0_i32_0 : i32, i32
  }
  func.func @transform_4(%arg0: i32) -> (i32, i32) {
    %c0_i32 = arith.constant 0 : i32
    %c0_i32_0 = arith.constant 0 : i32
    %c0_i32_1 = arith.constant 0 : i32
    return %c0_i32, %c0_i32_0 : i32, i32
  }
  func.func @transform_5(%arg0: i32) -> (i32, i32) {
    %c0_i32 = arith.constant 0 : i32
    %c0_i32_0 = arith.constant 0 : i32
    %c0_i32_1 = arith.constant 0 : i32
    return %c0_i32, %c0_i32_0 : i32, i32
  }
  func.func @transform_6(%arg0: i32) -> (i32, i32) {
    %c0_i32 = arith.constant 0 : i32
    %c0_i32_0 = arith.constant 0 : i32
    %c0_i32_1 = arith.constant 0 : i32
    return %c0_i32, %c0_i32_0 : i32, i32
  }
  func.func @transform_7(%arg0: i32) -> (i32, i32) {
    %c0_i32 = arith.constant 0 : i32
    %c0_i32_0 = arith.constant 0 : i32
    %c0_i32_1 = arith.constant 0 : i32
    return %c0_i32, %c0_i32_0 : i32, i32
  }
  func.func @transform_8(%arg0: i32) -> (i32, i32) {
    %c0_i32 = arith.constant 0 : i32
    %c0_i32_0 = arith.constant 0 : i32
    %c0_i32_1 = arith.constant 0 : i32
    return %c0_i32, %c0_i32_0 : i32, i32
  }
  func.func @transform_9(%arg0: i32) -> (i32, i32) {
    %c0_i32 = arith.constant 0 : i32
    %c0_i32_0 = arith.constant 0 : i32
    %c0_i32_1 = arith.constant 0 : i32
    return %c0_i32, %c0_i32_0 : i32, i32
  }
  func.func @transform_10(%arg0: i32) -> (i32, i32) {
    %c0_i32 = arith.constant 0 : i32
    %c0_i32_0 = arith.constant 0 : i32
    return %arg0, %c0_i32 : i32, i32
  }
  func.func @transform_11(%arg0: i32) -> (i32, i32) {
    %c0_i32 = arith.constant 0 : i32
    %c0_i32_0 = arith.constant 0 : i32
    return %arg0, %c0_i32 : i32, i32
  }
  func.func @transform_12(%arg0: i32) -> (i32, i32) {
    %c0_i32 = arith.constant 0 : i32
    %c0_i32_0 = arith.constant 0 : i32
    return %arg0, %c0_i32 : i32, i32
  }
}

</mosaic_0001>

<llo_original>
// kernel: generator_forward.1
$region0: #{generator_forward.1}
  #allocation0 [shape = 'u32[]', space=smem, size = 0x4, offset = 0x4, fixed_abs, tag = 'smem constant byte address 0x4 - core index']
  #allocation1 [shape = 'u32[144,128]{1,0:T(1,128)}', space=vmem, size = 0x12000, scoped, tag = 'internal scratch']
  %s0 = inlined_call_operand.vmem [shape: f32[16,128], index: 0, kind: input, shape index: {}]
  %s1 = inlined_call_operand.vmem [shape: f32[16,64], index: 1, kind: input, shape index: {}]
  %s2 = inlined_call_operand.vmem [shape: bf16[128,128], index: 2, kind: input, shape index: {}]
  %s3 = inlined_call_operand.vmem [shape: f32[1,128], index: 3, kind: input, shape index: {}]
  %s4 = inlined_call_operand.vmem [shape: bf16[128,128], index: 4, kind: input, shape index: {}]
  %s5 = inlined_call_operand.vmem [shape: f32[1,128], index: 5, kind: input, shape index: {}]
  %s6 = inlined_call_operand.vmem [shape: bf16[64,128], index: 6, kind: input, shape index: {}]
  %s7 = inlined_call_operand.vmem [shape: f32[1,128], index: 7, kind: input, shape index: {}]
  %s8 = inlined_call_operand.vmem [shape: bf16[128,128], index: 8, kind: input, shape index: {}]
  %s9 = inlined_call_operand.vmem [shape: f32[1,128], index: 9, kind: input, shape index: {}]
  %s10 = inlined_call_operand.hbm [shape: bf16[16,128], index: 10, kind: output, shape index: {0}]
  %s11 = inlined_call_operand.hbm [shape: bf16[16,64], index: 11, kind: output, shape index: {1}]
  %s12 = inlined_call_operand.hbm [shape: bf16[16,64], index: 12, kind: output, shape index: {2}]
  %13 = xla_tuple %s10, %s11, %s12
  %s14 = sld [smem:[#allocation0]]
  $region89: #{generator_forward.1} parent=0
    _
  %s16 = ssub.s32 1, %s14
  %s17 = scalar_select 0, %s16, %s14
  $region1: #{generator_forward.1} parent=0
    #allocation2 [shape = 'u8[4096]{0}', space=vmem, size = 0x1000, scoped, tag = 'output window, operand 0']
    #allocation3 [shape = 's32[2]{0}', space=sflag, size = 0x8, scoped, tag = 'scoped memory for generator_forward.1']
    #allocation4 [shape = 'u8[4096]{0}', space=vmem, size = 0x1000, scoped, tag = 'output window, operand 1']
    #allocation5 [shape = 's32[2]{0}', space=sflag, size = 0x8, scoped, tag = 'scoped memory for generator_forward.1']
    #allocation6 [shape = 'u8[4096]{0}', space=vmem, size = 0x1000, scoped, tag = 'output window, operand 2']
    %18 = vsyncpa [#allocation3], 0
    %s19 = scalar_lea.sflag [#allocation3], 1
    %20 = vsyncpa %s19, 0
    %21 = vsyncpa [#allocation5], 0
    %s22 = scalar_lea.sflag [#allocation5], 1
    %23 = vsyncpa %s22, 0
    loop: start=0, step=1, limit=4
    $region2: #{generator_forward.1} parent=1 // loop_pre_header
      _
    $region3: #{generator_forward.1} parent=1 // loop_header
      %s25 = sphi 0, %s29
      %p26 = scmp.ge.s32.totalorder %s25, 4
      %s35 = sphi 0, %s37
      %s38 = sphi 0, %s35
      %s39 = sphi 0, %s38
      %s55 = sphi 0, %s39
      %s61 = sphi 0, %s63
      %s64 = sphi 0, %s61
      %s65 = sphi 0, %s64
      %s81 = sphi 0, %s65
      %s85 = sphi 0, %s85
      %s87 = sphi 0, %s85
      %s88 = sphi 0, %s87
      %s102 = sphi 0, %s88
      %s106 = sphi 0, %s106
      %s108 = sphi 0, %s106
      %s109 = sphi 0, %s108
      %s123 = sphi 0, %s109
      %s127 = sphi 0, %s127
      %s129 = sphi 0, %s127
      %s130 = sphi 0, %s129
      %s144 = sphi 0, %s130
      %s148 = sphi 0, %s148
      %s150 = sphi 0, %s148
      %s151 = sphi 0, %s150
      %s165 = sphi 0, %s151
      %s169 = sphi 0, %s169
      %s171 = sphi 0, %s169
      %s172 = sphi 0, %s171
      %s186 = sphi 0, %s172
      %s190 = sphi 0, %s190
      %s192 = sphi 0, %s190
      %s193 = sphi 0, %s192
      %s207 = sphi 0, %s193
      %s211 = sphi 0, %s211
      %s213 = sphi 0, %s211
      %s214 = sphi 0, %s213
      %s228 = sphi 0, %s214
      %s232 = sphi 0, %s232
      %s234 = sphi 0, %s232
      %s235 = sphi 0, %s234
      %s249 = sphi 0, %s235
      %s255 = sphi 0, %s257
      %s258 = sphi 0, %s255
      %s259 = sphi 0, %s258
      %s275 = sphi 0, %s259
      %s281 = sphi 0, %s283
      %s284 = sphi 0, %s281
      %s285 = sphi 0, %s284
      %s301 = sphi 0, %s285
      %s307 = sphi 0, %s309
      %s310 = sphi 0, %s307
      %s311 = sphi 0, %s310
      %s327 = sphi 0, %s311
    $region4: #{generator_forward.1} parent=1 // loop_header_branch
      %28 = sbr.rel (%p26) target = $region8
    $region5: #{generator_forward.1} parent=1 // loop_body
      %s30 = ssub.s32 %s25, 1
      %s31 = ssub.s32 %s25, 2
      %s32 = sadd.s32 %s25, 1
      %s33 = ssub.s32 %s25, %s32
      %p34 = scmp.eq.s32.totalorder %s33, 0
      %s36 = sadd.s32 %s35, 1
      %s37 = scalar_select %p34, %s35, %s36
      %p40 = pneg %p34
      %p41 = scmp.eq.s32.totalorder %s25, 1
      %p42 = por %p40, %p41
      %p43 = scmp.ne.s32.totalorder %s35, %s38
      %p44 = scmp.eq.s32.totalorder %s25, 0
      %p45 = por %p43, %p44
      %p46 = scmp.ne.s32.totalorder %s35, %s38
      %p47 = scmp.eq.s32.totalorder %s30, 1
      %p48 = por %p46, %p47
      %p49 = scmp.ne.s32.totalorder %s38, %s39
      %p50 = scmp.eq.s32.totalorder %s30, 0
      %p51 = por %p49, %p50
      %p52 = scmp.ne.s32.totalorder %s38, %s39
      %p53 = scmp.eq.s32.totalorder %s31, 1
      %p54 = por %p52, %p53
      %p56 = scmp.ne.s32.totalorder %s39, %s55
      %p57 = scmp.eq.s32.totalorder %s31, 0
      %p58 = por %p56, %p57
      %s59 = ssub.s32 %s25, %s32
      %p60 = scmp.eq.s32.totalorder %s59, 0
      %s62 = sadd.s32 %s61, 1
      %s63 = scalar_select %p60, %s61, %s62
      %p66 = pneg %p60
      %p67 = scmp.eq.s32.totalorder %s25, 1
      %p68 = por %p66, %p67
      %p69 = scmp.ne.s32.totalorder %s61, %s64
      %p70 = scmp.eq.s32.totalorder %s25, 0
      %p71 = por %p69, %p70
      %p72 = scmp.ne.s32.totalorder %s61, %s64
      %p73 = scmp.eq.s32.totalorder %s30, 1
      %p74 = por %p72, %p73
      %p75 = scmp.ne.s32.totalorder %s64, %s65
      %p76 = scmp.eq.s32.totalorder %s30, 0
      %p77 = por %p75, %p76
      %p78 = scmp.ne.s32.totalorder %s64, %s65
      %p79 = scmp.eq.s32.totalorder %s31, 1
      %p80 = por %p78, %p79
      %p82 = scmp.ne.s32.totalorder %s65, %s81
      %p83 = scmp.eq.s32.totalorder %s31, 0
      %p84 = por %p82, %p83
      %s86 = sadd.s32 %s85, 1
      %p89 = scmp.eq.s32.totalorder %s25, 1
      %p90 = scmp.ne.s32.totalorder %s85, %s87
      %p91 = scmp.eq.s32.totalorder %s25, 0
      %p92 = por %p90, %p91
      %p93 = scmp.ne.s32.totalorder %s85, %s87
      %p94 = scmp.eq.s32.totalorder %s30, 1
      %p95 = por %p93, %p94
      %p96 = scmp.ne.s32.totalorder %s87, %s88
      %p97 = scmp.eq.s32.totalorder %s30, 0
      %p98 = por %p96, %p97
      %p99 = scmp.ne.s32.totalorder %s87, %s88
      %p100 = scmp.eq.s32.totalorder %s31, 1
      %p101 = por %p99, %p100
      %p103 = scmp.ne.s32.totalorder %s88, %s102
      %p104 = scmp.eq.s32.totalorder %s31, 0
      %p105 = por %p103, %p104
      %s107 = sadd.s32 %s106, 1
      %p110 = scmp.eq.s32.totalorder %s25, 1
      %p111 = scmp.ne.s32.totalorder %s106, %s108
      %p112 = scmp.eq.s32.totalorder %s25, 0
      %p113 = por %p111, %p112
      %p114 = scmp.ne.s32.totalorder %s106, %s108
      %p115 = scmp.eq.s32.totalorder %s30, 1
      %p116 = por %p114, %p115
      %p117 = scmp.ne.s32.totalorder %s108, %s109
      %p118 = scmp.eq.s32.totalorder %s30, 0
      %p119 = por %p117, %p118
      %p120 = scmp.ne.s32.totalorder %s108, %s109
      %p121 = scmp.eq.s32.totalorder %s31, 1
      %p122 = por %p120, %p121
      %p124 = scmp.ne.s32.totalorder %s109, %s123
      %p125 = scmp.eq.s32.totalorder %s31, 0
      %p126 = por %p124, %p125
      %s128 = sadd.s32 %s127, 1
      %p131 = scmp.eq.s32.totalorder %s25, 1
      %p132 = scmp.ne.s32.totalorder %s127, %s129
      %p133 = scmp.eq.s32.totalorder %s25, 0
      %p134 = por %p132, %p133
      %p135 = scmp.ne.s32.totalorder %s127, %s129
      %p136 = scmp.eq.s32.totalorder %s30, 1
      %p137 = por %p135, %p136
      %p138 = scmp.ne.s32.totalorder %s129, %s130
      %p139 = scmp.eq.s32.totalorder %s30, 0
      %p140 = por %p138, %p139
      %p141 = scmp.ne.s32.totalorder %s129, %s130
      %p142 = scmp.eq.s32.totalorder %s31, 1
      %p143 = por %p141, %p142
      %p145 = scmp.ne.s32.totalorder %s130, %s144
      %p146 = scmp.eq.s32.totalorder %s31, 0
      %p147 = por %p145, %p146
      %s149 = sadd.s32 %s148, 1
      %p152 = scmp.eq.s32.totalorder %s25, 1
      %p153 = scmp.ne.s32.totalorder %s148, %s150
      %p154 = scmp.eq.s32.totalorder %s25, 0
      %p155 = por %p153, %p154
      %p156 = scmp.ne.s32.totalorder %s148, %s150
      %p157 = scmp.eq.s32.totalorder %s30, 1
      %p158 = por %p156, %p157
      %p159 = scmp.ne.s32.totalorder %s150, %s151
      %p160 = scmp.eq.s32.totalorder %s30, 0
      %p161 = por %p159, %p160
      %p162 = scmp.ne.s32.totalorder %s150, %s151
      %p163 = scmp.eq.s32.totalorder %s31, 1
      %p164 = por %p162, %p163
      %p166 = scmp.ne.s32.totalorder %s151, %s165
      %p167 = scmp.eq.s32.totalorder %s31, 0
      %p168 = por %p166, %p167
      %s170 = sadd.s32 %s169, 1
      %p173 = scmp.eq.s32.totalorder %s25, 1
      %p174 = scmp.ne.s32.totalorder %s169, %s171
      %p175 = scmp.eq.s32.totalorder %s25, 0
      %p176 = por %p174, %p175
      %p177 = scmp.ne.s32.totalorder %s169, %s171
      %p178 = scmp.eq.s32.totalorder %s30, 1
      %p179 = por %p177, %p178
      %p180 = scmp.ne.s32.totalorder %s171, %s172
      %p181 = scmp.eq.s32.totalorder %s30, 0
      %p182 = por %p180, %p181
      %p183 = scmp.ne.s32.totalorder %s171, %s172
      %p184 = scmp.eq.s32.totalorder %s31, 1
      %p185 = por %p183, %p184
      %p187 = scmp.ne.s32.totalorder %s172, %s186
      %p188 = scmp.eq.s32.totalorder %s31, 0
      %p189 = por %p187, %p188
      %s191 = sadd.s32 %s190, 1
      %p194 = scmp.eq.s32.totalorder %s25, 1
      %p195 = scmp.ne.s32.totalorder %s190, %s192
      %p196 = scmp.eq.s32.totalorder %s25, 0
      %p197 = por %p195, %p196
      %p198 = scmp.ne.s32.totalorder %s190, %s192
      %p199 = scmp.eq.s32.totalorder %s30, 1
      %p200 = por %p198, %p199
      %p201 = scmp.ne.s32.totalorder %s192, %s193
      %p202 = scmp.eq.s32.totalorder %s30, 0
      %p203 = por %p201, %p202
      %p204 = scmp.ne.s32.totalorder %s192, %s193
      %p205 = scmp.eq.s32.totalorder %s31, 1
      %p206 = por %p204, %p205
      %p208 = scmp.ne.s32.totalorder %s193, %s207
      %p209 = scmp.eq.s32.totalorder %s31, 0
      %p210 = por %p208, %p209
      %s212 = sadd.s32 %s211, 1
      %p215 = scmp.eq.s32.totalorder %s25, 1
      %p216 = scmp.ne.s32.totalorder %s211, %s213
      %p217 = scmp.eq.s32.totalorder %s25, 0
      %p218 = por %p216, %p217
      %p219 = scmp.ne.s32.totalorder %s211, %s213
      %p220 = scmp.eq.s32.totalorder %s30, 1
      %p221 = por %p219, %p220
      %p222 = scmp.ne.s32.totalorder %s213, %s214
      %p223 = scmp.eq.s32.totalorder %s30, 0
      %p224 = por %p222, %p223
      %p225 = scmp.ne.s32.totalorder %s213, %s214
      %p226 = scmp.eq.s32.totalorder %s31, 1
      %p227 = por %p225, %p226
      %p229 = scmp.ne.s32.totalorder %s214, %s228
      %p230 = scmp.eq.s32.totalorder %s31, 0
      %p231 = por %p229, %p230
      %s233 = sadd.s32 %s232, 1
      %p236 = scmp.eq.s32.totalorder %s25, 1
      %p237 = scmp.ne.s32.totalorder %s232, %s234
      %p238 = scmp.eq.s32.totalorder %s25, 0
      %p239 = por %p237, %p238
      %p240 = scmp.ne.s32.totalorder %s232, %s234
      %p241 = scmp.eq.s32.totalorder %s30, 1
      %p242 = por %p240, %p241
      %p243 = scmp.ne.s32.totalorder %s234, %s235
      %p244 = scmp.eq.s32.totalorder %s30, 0
      %p245 = por %p243, %p244
      %p246 = scmp.ne.s32.totalorder %s234, %s235
      %p247 = scmp.eq.s32.totalorder %s31, 1
      %p248 = por %p246, %p247
      %p250 = scmp.ne.s32.totalorder %s235, %s249
      %p251 = scmp.eq.s32.totalorder %s31, 0
      %p252 = por %p250, %p251
      %s253 = ssub.s32 %s25, %s32
      %p254 = scmp.eq.s32.totalorder %s253, 0
      %s256 = sadd.s32 %s255, 1
      %s257 = scalar_select %p254, %s255, %s256
      %p260 = pneg %p254
      %p261 = scmp.eq.s32.totalorder %s25, 1
      %p262 = por %p260, %p261
      %p263 = scmp.ne.s32.totalorder %s255, %s258
      %p264 = scmp.eq.s32.totalorder %s25, 0
      %p265 = por %p263, %p264
      %p266 = scmp.ne.s32.totalorder %s255, %s258
      %p267 = scmp.eq.s32.totalorder %s30, 1
      %p268 = por %p266, %p267
      %p269 = scmp.ne.s32.totalorder %s258, %s259
      %p270 = scmp.eq.s32.totalorder %s30, 0
      %p271 = por %p269, %p270
      %p272 = scmp.ne.s32.totalorder %s258, %s259
      %p273 = scmp.eq.s32.totalorder %s31, 1
      %p274 = por %p272, %p273
      %p276 = scmp.ne.s32.totalorder %s259, %s275
      %p277 = scmp.eq.s32.totalorder %s31, 0
      %p278 = por %p276, %p277
      %s279 = ssub.s32 %s25, %s32
      %p280 = scmp.eq.s32.totalorder %s279, 0
      %s282 = sadd.s32 %s281, 1
      %s283 = scalar_select %p280, %s281, %s282
      %p286 = pneg %p280
      %p287 = scmp.eq.s32.totalorder %s25, 1
      %p288 = por %p286, %p287
      %p289 = scmp.ne.s32.totalorder %s281, %s284
      %p290 = scmp.eq.s32.totalorder %s25, 0
      %p291 = por %p289, %p290
      %p292 = scmp.ne.s32.totalorder %s281, %s284
      %p293 = scmp.eq.s32.totalorder %s30, 1
      %p294 = por %p292, %p293
      %p295 = scmp.ne.s32.totalorder %s284, %s285
      %p296 = scmp.eq.s32.totalorder %s30, 0
      %p297 = por %p295, %p296
      %p298 = scmp.ne.s32.totalorder %s284, %s285
      %p299 = scmp.eq.s32.totalorder %s31, 1
      %p300 = por %p298, %p299
      %p302 = scmp.ne.s32.totalorder %s285, %s301
      %p303 = scmp.eq.s32.totalorder %s31, 0
      %p304 = por %p302, %p303
      %s305 = ssub.s32 %s25, %s32
      %p306 = scmp.eq.s32.totalorder %s305, 0
      %s308 = sadd.s32 %s307, 1
      %s309 = scalar_select %p306, %s307, %s308
      %p312 = pneg %p306
      %p313 = scmp.eq.s32.totalorder %s25, 1
      %p314 = por %p312, %p313
      %p315 = scmp.ne.s32.totalorder %s307, %s310
      %p316 = scmp.eq.s32.totalorder %s25, 0
      %p317 = por %p315, %p316
      %p318 = scmp.ne.s32.totalorder %s307, %s310
      %p319 = scmp.eq.s32.totalorder %s30, 1
      %p320 = por %p318, %p319
      %p321 = scmp.ne.s32.totalorder %s310, %s311
      %p322 = scmp.eq.s32.totalorder %s30, 0
      %p323 = por %p321, %p322
      %p324 = scmp.ne.s32.totalorder %s310, %s311
      %p325 = scmp.eq.s32.totalorder %s31, 1
      %p326 = por %p324, %p325
      %p328 = scmp.ne.s32.totalorder %s311, %s327
      %p329 = scmp.eq.s32.totalorder %s31, 0
      %p330 = por %p328, %p329
      %p331 = scmp.le.s32.totalorder 1, %s25
      %p332 = scmp.lt.s32.totalorder %s25, 3
      %p333 = pnand %p331, %p332
      %p334 = pneg %p333
      // Predicated region
      $region9: #{generator_forward.1} parent=5 // pred_check
        _
      $region10: #{generator_forward.1} parent=5 // pred_check_branch
        %336 = sbr.rel (%p333) target = $region12
      $region11: #{generator_forward.1} parent=5 // pred_region
        %s337 = ssub.s32 %s25, 1
        // Predicated region
        $region13: #{generator_forward.1} parent=11 // pred_check
          %p338 = pneg %p98
        $region14: #{generator_forward.1} parent=11 // pred_check_branch
          %340 = sbr.rel (%p338) target = $region16
        $region15: #{generator_forward.1} parent=11 // pred_region
          _
        $region16: #{generator_forward.1} parent=11 // pred_fallthru
          _
        // Predicated region
        $region17: #{generator_forward.1} parent=11 // pred_check
          %p341 = pneg %p119
        $region18: #{generator_forward.1} parent=11 // pred_check_branch
          %343 = sbr.rel (%p341) target = $region20
        $region19: #{generator_forward.1} parent=11 // pred_region
          _
        $region20: #{generator_forward.1} parent=11 // pred_fallthru
          _
        // Predicated region
        $region21: #{generator_forward.1} parent=11 // pred_check
          %p344 = pneg %p140
        $region22: #{generator_forward.1} parent=11 // pred_check_branch
          %346 = sbr.rel (%p344) target = $region24
        $region23: #{generator_forward.1} parent=11 // pred_region
          _
        $region24: #{generator_forward.1} parent=11 // pred_fallthru
          _
        // Predicated region
        $region25: #{generator_forward.1} parent=11 // pred_check
          %p347 = pneg %p161
        $region26: #{generator_forward.1} parent=11 // pred_check_branch
          %349 = sbr.rel (%p347) target = $region28
        $region27: #{generator_forward.1} parent=11 // pred_region
          _
        $region28: #{generator_forward.1} parent=11 // pred_fallthru
          _
        // Predicated region
        $region29: #{generator_forward.1} parent=11 // pred_check
          %p350 = pneg %p182
        $region30: #{generator_forward.1} parent=11 // pred_check_branch
          %352 = sbr.rel (%p350) target = $region32
        $region31: #{generator_forward.1} parent=11 // pred_region
          _
        $region32: #{generator_forward.1} parent=11 // pred_fallthru
          _
        // Predicated region
        $region33: #{generator_forward.1} parent=11 // pred_check
          %p353 = pneg %p203
        $region34: #{generator_forward.1} parent=11 // pred_check_branch
          %355 = sbr.rel (%p353) target = $region36
        $region35: #{generator_forward.1} parent=11 // pred_region
          _
        $region36: #{generator_forward.1} parent=11 // pred_fallthru
          _
        // Predicated region
        $region37: #{generator_forward.1} parent=11 // pred_check
          %p356 = pneg %p224
        $region38: #{generator_forward.1} parent=11 // pred_check_branch
          %358 = sbr.rel (%p356) target = $region40
        $region39: #{generator_forward.1} parent=11 // pred_region
          _
        $region40: #{generator_forward.1} parent=11 // pred_fallthru
          _
        // Predicated region
        $region41: #{generator_forward.1} parent=11 // pred_check
          %p359 = pneg %p245
        $region42: #{generator_forward.1} parent=11 // pred_check_branch
          %361 = sbr.rel (%p359) target = $region44
        $region43: #{generator_forward.1} parent=11 // pred_region
          _
        $region44: #{generator_forward.1} parent=11 // pred_fallthru
          _
      $region12: #{generator_forward.1} parent=5 // pred_fallthru
        _
      %p362 = scmp.lt.s32.totalorder %s25, 2
      // Predicated region
      $region45: #{generator_forward.1} parent=5 // pred_check
        %p363 = pneg %p362
      $region46: #{generator_forward.1} parent=5 // pred_check_branch
        %365 = sbr.rel (%p363) target = $region48
      $region47: #{generator_forward.1} parent=5 // pred_region
        // Predicated region
        $region49: #{generator_forward.1} parent=47 // pred_check
          %p366 = pneg %p45
        $region50: #{generator_forward.1} parent=47 // pred_check_branch
          %368 = sbr.rel (%p366) target = $region52
        $region51: #{generator_forward.1} parent=47 // pred_region
          %p369 = scmp.lt.s32.totalorder %s25, 1
          %s370 = scalar_select %p369, %s25, 1
          %s371 = smul.addr %s370, 8
          %s372 = scalar_lea.vmem %s0, %s371
        $region52: #{generator_forward.1} parent=47 // pred_fallthru
          _
        // Predicated region
        $region53: #{generator_forward.1} parent=47 // pred_check
          %p373 = pneg %p71
        $region54: #{generator_forward.1} parent=47 // pred_check_branch
          %375 = sbr.rel (%p373) target = $region56
        $region55: #{generator_forward.1} parent=47 // pred_region
          %p376 = scmp.lt.s32.totalorder %s25, 1
          %s377 = scalar_select %p376, %s25, 1
          %s378 = smul.addr %s377, 8
          %s379 = scalar_lea.vmem %s1, %s378
        $region56: #{generator_forward.1} parent=47 // pred_fallthru
          _
      $region48: #{generator_forward.1} parent=5 // pred_fallthru
        _
      %p380 = scmp.le.s32.totalorder 1, %s25
      %p381 = scmp.lt.s32.totalorder %s25, 3
      %p382 = pnand %p380, %p381
      %p383 = pneg %p382
      // Predicated region
      $region57: #{generator_forward.1} parent=5 // pred_check
        _
      $region58: #{generator_forward.1} parent=5 // pred_check_branch
        %385 = sbr.rel (%p382) target = $region60
      $region59: #{generator_forward.1} parent=5 // pred_region
        %s386 = ssub.s32 %s25, 1
        %p387 = scmp.lt.s32.totalorder %s30, 1
        %s388 = scalar_select %p387, %s30, 1
        %s389 = smul.addr %s388, 8
        %s390 = scalar_lea.vmem %s0, %s389
        %p391 = pneg %p51
        %p392 = pneg %p48
        %p393 = scmp.lt.s32.totalorder %s30, 1
        %s394 = scalar_select %p393, %s30, 1
        %s395 = smul.addr %s394, 8
        %s396 = scalar_lea.vmem %s1, %s395
        %p397 = pneg %p77
        %p398 = pneg %p74
        %p399 = pneg %p98
        %p400 = pneg %p95
        %p401 = pneg %p119
        %p402 = pneg %p116
        %p403 = pneg %p140
        %p404 = pneg %p137
        %p405 = pneg %p161
        %p406 = pneg %p158
        %p407 = pneg %p182
        %p408 = pneg %p179
        %p409 = pneg %p203
        %p410 = pneg %p200
        %p411 = pneg %p224
        %p412 = pneg %p221
        %p413 = pneg %p245
        %p414 = pneg %p242
        %p415 = pneg %p271
        %p416 = pneg %p268
        %s417 = sand.u32 %s258, 1
        %s418 = scalar_lea.sflag [#allocation3], %s417
        %s419 = sand.u32 %s258, 1
        %s420 = smul.addr %s419, 4
        %s421 = scalar_lea.vmem [#allocation2], %s420
        %p422 = pneg %p297
        %p423 = pneg %p294
        %s424 = sand.u32 %s30, 1
        %s425 = scalar_lea.sflag [#allocation5], %s424
        %s426 = sand.u32 %s284, 1
        %s427 = smul.addr %s426, 4
        %s428 = scalar_lea.vmem [#allocation4], %s427
        %p429 = pneg %p323
        %p430 = pneg %p320
        %s431 = sand.u32 %s30, 1
        %s432 = scalar_lea.sflag [#allocation5], %s431
        %s433 = sand.u32 %s310, 1
        %s434 = smul.addr %s433, 4
        %s435 = scalar_lea.vmem [#allocation6], %s434
        %p436 = scmp.lt.s32.totalorder %s30, 1
        %s437 = scalar_select %p436, %s30, 1
        %s438 = smul.addr %s437, 8
        %s439 = scalar_lea.vmem %s0, %s438
        %p440 = scmp.lt.s32.totalorder %s30, 1
        %s441 = scalar_select %p440, %s30, 1
        %s442 = smul.addr %s441, 8
        %s443 = scalar_lea.vmem %s1, %s442
        %v445 = vld [vmem:[%s439] sm:$0xff]
        %v446 = vpack.c.bf16 %v445, %v445
        %v447 = vld [vmem:[%s2] sm:$0xf]
        %v448 = vld [vmem:[%s2 + $0x4] sm:$0xf]
        %v449 = vld [vmem:[%s2 + $0x8] sm:$0xf]
        %v450 = vld [vmem:[%s2 + $0xc] sm:$0xf]
        %v451 = vld [vmem:[%s2 + $0x10] sm:$0xf]
        %v452 = vld [vmem:[%s2 + $0x14] sm:$0xf]
        %v453 = vld [vmem:[%s2 + $0x18] sm:$0xf]
        %v454 = vld [vmem:[%s2 + $0x1c] sm:$0xf]
        %v455 = vld [vmem:[%s2 + $0x20] sm:$0xf]
        %v456 = vld [vmem:[%s2 + $0x24] sm:$0xf]
        %v457 = vld [vmem:[%s2 + $0x28] sm:$0xf]
        %v458 = vld [vmem:[%s2 + $0x2c] sm:$0xf]
        %v459 = vld [vmem:[%s2 + $0x30] sm:$0xf]
        %v460 = vld [vmem:[%s2 + $0x34] sm:$0xf]
        %v461 = vld [vmem:[%s2 + $0x38] sm:$0xf]
        %v462 = vld [vmem:[%s2 + $0x3c] sm:$0xf]
        %v463 = vld [vmem:[%s3] sm:$0x1]
        %v465 = vlaneseq
        %v466 = vshrl.u32 %v465, 7
        %v467 = vsub.s32 0, %v466
        %v468 = vrot.slane %v463, %v467
        %v486 = vunpack.c.l.b16 %v447
        %v487 = vunpack.c.l.b16 %v448
        %v488 = vunpack.c.l.b16 %v449
        %v489 = vunpack.c.l.b16 %v450
        %v490 = vunpack.c.l.b16 %v451
        %v491 = vunpack.c.l.b16 %v452
        %v492 = vunpack.c.l.b16 %v453
        %v493 = vunpack.c.l.b16 %v454
        %v494 = vunpack.c.l.b16 %v455
        %v495 = vunpack.c.l.b16 %v456
        %v496 = vunpack.c.l.b16 %v457
        %v497 = vunpack.c.l.b16 %v458
        %v498 = vunpack.c.l.b16 %v459
        %v499 = vunpack.c.l.b16 %v460
        %v500 = vunpack.c.l.b16 %v461
        %v501 = vunpack.c.l.b16 %v462
        %v502 = vpack.c.b16 %v487, %v486
        %v503 = vpack.c.b16 %v489, %v488
        %v504 = vpack.c.b16 %v491, %v490
        %v505 = vpack.c.b16 %v493, %v492
        %v506 = vpack.c.b16 %v495, %v494
        %v507 = vpack.c.b16 %v497, %v496
        %v508 = vpack.c.b16 %v499, %v498
        %v509 = vpack.c.b16 %v501, %v500
        %518 = vmatprep.subr.bf16.mxu0 0
        %519 = vmatpush1.bf16.msra.mxu0 %v502
        %520 = vmatprep.subr.bf16.mxu0 0
        %521 = vmatpush1.bf16.msra.mxu0 %v503
        %522 = vmatprep.subr.bf16.mxu0 0
        %523 = vmatpush1.bf16.msra.mxu0 %v504
        %524 = vmatprep.subr.bf16.mxu0 0
        %525 = vmatpush1.bf16.msra.mxu0 %v505
        %526 = vmatprep.subr.bf16.mxu0 0
        %527 = vmatpush1.bf16.msra.mxu0 %v506
        %528 = vmatprep.subr.bf16.mxu0 0
        %529 = vmatpush1.bf16.msra.mxu0 %v507
        %530 = vmatprep.subr.bf16.mxu0 0
        %531 = vmatpush1.bf16.msra.mxu0 %v508
        %532 = vmatprep.subr.bf16.mxu0 0
        %533 = vmatpush1.bf16.msra.mxu0 %v509
        %534 = vmatprep.subr.bf16.mxu0 0
        %535 = vmatpush1.bf16.msra.mxu0 0
        %536 = vmatprep.subr.bf16.mxu0 0
        %537 = vmatpush1.bf16.msra.mxu0 0
        %538 = vmatprep.subr.bf16.mxu0 0
        %539 = vmatpush1.bf16.msra.mxu0 0
        %540 = vmatprep.subr.bf16.mxu0 0
        %541 = vmatpush1.bf16.msra.mxu0 0
        %542 = vmatprep.subr.bf16.mxu0 0
        %543 = vmatpush1.bf16.msra.mxu0 0
        %544 = vmatprep.subr.bf16.mxu0 0
        %545 = vmatpush1.bf16.msra.mxu0 0
        %546 = vmatprep.subr.bf16.mxu0 0
        %547 = vmatpush1.bf16.msra.mxu0 0
        %548 = vmatprep.subr.bf16.mxu0 0
        %549 = vmatpush1.bf16.msra.mxu0 0
        %550 = vmatprep.mubr.bf16.mxu0 0
        %551 = vmatmul.mubr.bf16.gmra.mrb[0].mxu0 %v446
        %v552 = vpop.f32.mrb[0].mxu0
        %v553 = vadd.f32 %v468, %v552
        %v554 = vpop.f32.mrb[0].mxu0
        %v555 = vpop.f32.mrb[0].mxu0
        %v556 = vpop.f32.mrb[0].mxu0
        %557 = vdwg.mxu0
        %v558 = vtanh.pop %v553
        %v559 = vpack.c.bf16 %v558, %v558
        %v560 = vld [vmem:[%s4] sm:$0xf]
        %v561 = vld [vmem:[%s4 + $0x4] sm:$0xf]
        %v562 = vld [vmem:[%s4 + $0x8] sm:$0xf]
        %v563 = vld [vmem:[%s4 + $0xc] sm:$0xf]
        %v564 = vld [vmem:[%s4 + $0x10] sm:$0xf]
        %v565 = vld [vmem:[%s4 + $0x14] sm:$0xf]
        %v566 = vld [vmem:[%s4 + $0x18] sm:$0xf]
        %v567 = vld [vmem:[%s4 + $0x1c] sm:$0xf]
        %v568 = vld [vmem:[%s4 + $0x20] sm:$0xf]
        %v569 = vld [vmem:[%s4 + $0x24] sm:$0xf]
        %v570 = vld [vmem:[%s4 + $0x28] sm:$0xf]
        %v571 = vld [vmem:[%s4 + $0x2c] sm:$0xf]
        %v572 = vld [vmem:[%s4 + $0x30] sm:$0xf]
        %v573 = vld [vmem:[%s4 + $0x34] sm:$0xf]
        %v574 = vld [vmem:[%s4 + $0x38] sm:$0xf]
        %v575 = vld [vmem:[%s4 + $0x3c] sm:$0xf]
        %v576 = vld [vmem:[%s5] sm:$0x1]
        %v578 = vlaneseq
        %v579 = vshrl.u32 %v578, 7
        %v580 = vsub.s32 0, %v579
        %v581 = vrot.slane %v576, %v580
        %v599 = vunpack.c.l.b16 %v560
        %v600 = vunpack.c.l.b16 %v561
        %v601 = vunpack.c.l.b16 %v562
        %v602 = vunpack.c.l.b16 %v563
        %v603 = vunpack.c.l.b16 %v564
        %v604 = vunpack.c.l.b16 %v565
        %v605 = vunpack.c.l.b16 %v566
        %v606 = vunpack.c.l.b16 %v567
        %v607 = vunpack.c.l.b16 %v568
        %v608 = vunpack.c.l.b16 %v569
        %v609 = vunpack.c.l.b16 %v570
        %v610 = vunpack.c.l.b16 %v571
        %v611 = vunpack.c.l.b16 %v572
        %v612 = vunpack.c.l.b16 %v573
        %v613 = vunpack.c.l.b16 %v574
        %v614 = vunpack.c.l.b16 %v575
        %v615 = vpack.c.b16 %v600, %v599
        %v616 = vpack.c.b16 %v602, %v601
        %v617 = vpack.c.b16 %v604, %v603
        %v618 = vpack.c.b16 %v606, %v605
        %v619 = vpack.c.b16 %v608, %v607
        %v620 = vpack.c.b16 %v610, %v609
        %v621 = vpack.c.b16 %v612, %v611
        %v622 = vpack.c.b16 %v614, %v613
        %631 = vmatprep.subr.bf16.mxu0 0
        %632 = vmatpush1.bf16.msra.mxu0 %v615
        %633 = vmatprep.subr.bf16.mxu0 0
        %634 = vmatpush1.bf16.msra.mxu0 %v616
        %635 = vmatprep.subr.bf16.mxu0 0
        %636 = vmatpush1.bf16.msra.mxu0 %v617
        %637 = vmatprep.subr.bf16.mxu0 0
        %638 = vmatpush1.bf16.msra.mxu0 %v618
        %639 = vmatprep.subr.bf16.mxu0 0
        %640 = vmatpush1.bf16.msra.mxu0 %v619
        %641 = vmatprep.subr.bf16.mxu0 0
        %642 = vmatpush1.bf16.msra.mxu0 %v620
        %643 = vmatprep.subr.bf16.mxu0 0
        %644 = vmatpush1.bf16.msra.mxu0 %v621
        %645 = vmatprep.subr.bf16.mxu0 0
        %646 = vmatpush1.bf16.msra.mxu0 %v622
        %647 = vmatprep.subr.bf16.mxu0 0
        %648 = vmatpush1.bf16.msra.mxu0 0
        %649 = vmatprep.subr.bf16.mxu0 0
        %650 = vmatpush1.bf16.msra.mxu0 0
        %651 = vmatprep.subr.bf16.mxu0 0
        %652 = vmatpush1.bf16.msra.mxu0 0
        %653 = vmatprep.subr.bf16.mxu0 0
        %654 = vmatpush1.bf16.msra.mxu0 0
        %655 = vmatprep.subr.bf16.mxu0 0
        %656 = vmatpush1.bf16.msra.mxu0 0
        %657 = vmatprep.subr.bf16.mxu0 0
        %658 = vmatpush1.bf16.msra.mxu0 0
        %659 = vmatprep.subr.bf16.mxu0 0
        %660 = vmatpush1.bf16.msra.mxu0 0
        %661 = vmatprep.subr.bf16.mxu0 0
        %662 = vmatpush1.bf16.msra.mxu0 0
        %663 = vmatprep.mubr.bf16.mxu0 0
        %664 = vmatmul.mubr.bf16.gmra.mrb[0].mxu0 %v559
        %v665 = vpop.f32.mrb[0].mxu0
        %v666 = vadd.f32 %v581, %v665
        %v667 = vpop.f32.mrb[0].mxu0
        %v668 = vpop.f32.mrb[0].mxu0
        %v669 = vpop.f32.mrb[0].mxu0
        %670 = vdwg.mxu0
        %v671 = vld [vmem:[%s443] sm:$0xff]
        %v672 = vmul.f32 %v666, 0.5
        %v673 = vmul.f32 %v672, 1.442695
        %v674 = vpow.pop %v673
        %676 = vrot.lane.b32.xlu0 %v674, 64
        %v677 = vpop.permute.xlu0 %676
        %v679 = vmul.f32 %v671, %v677
        %v680 = vadd.f32 %v666, %v679
        %v681 = vpack.c.bf16 %v680, %v680
        %v682 = vld [vmem:[%s6] sm:$0xf]
        %v683 = vld [vmem:[%s6 + $0x4] sm:$0xf]
        %v684 = vld [vmem:[%s6 + $0x8] sm:$0xf]
        %v685 = vld [vmem:[%s6 + $0xc] sm:$0xf]
        %v686 = vld [vmem:[%s6 + $0x10] sm:$0xf]
        %v687 = vld [vmem:[%s6 + $0x14] sm:$0xf]
        %v688 = vld [vmem:[%s6 + $0x18] sm:$0xf]
        %v689 = vld [vmem:[%s6 + $0x1c] sm:$0xf]
        %v690 = vld [vmem:[%s7] sm:$0x1]
        %v692 = vlaneseq
        %v693 = vshrl.u32 %v692, 7
        %v694 = vsub.s32 0, %v693
        %v695 = vrot.slane %v690, %v694
        %v705 = vunpack.c.l.b16 %v682
        %v706 = vunpack.c.l.b16 %v683
        %v707 = vunpack.c.l.b16 %v684
        %v708 = vunpack.c.l.b16 %v685
        %v709 = vunpack.c.l.b16 %v686
        %v710 = vunpack.c.l.b16 %v687
        %v711 = vunpack.c.l.b16 %v688
        %v712 = vunpack.c.l.b16 %v689
        %v713 = vpack.c.b16 %v706, %v705
        %v714 = vpack.c.b16 %v708, %v707
        %v715 = vpack.c.b16 %v710, %v709
        %v716 = vpack.c.b16 %v712, %v711
        %vm721 = vcmask 523264
        %v723 = vsel %vm721, %v681, 0
        %725 = vmatprep.subr.bf16.mxu0 0
        %726 = vmatpush1.bf16.msra.mxu0 %v713
        %727 = vmatprep.subr.bf16.mxu0 0
        %728 = vmatpush1.bf16.msra.mxu0 %v714
        %729 = vmatprep.subr.bf16.mxu0 0
        %730 = vmatpush1.bf16.msra.mxu0 %v715
        %731 = vmatprep.subr.bf16.mxu0 0
        %732 = vmatpush1.bf16.msra.mxu0 %v716
        %733 = vmatprep.subr.bf16.mxu0 0
        %734 = vmatpush1.bf16.msra.mxu0 0
        %735 = vmatprep.subr.bf16.mxu0 0
        %736 = vmatpush1.bf16.msra.mxu0 0
        %737 = vmatprep.subr.bf16.mxu0 0
        %738 = vmatpush1.bf16.msra.mxu0 0
        %739 = vmatprep.subr.bf16.mxu0 0
        %740 = vmatpush1.bf16.msra.mxu0 0
        %741 = vmatprep.subr.bf16.mxu0 0
        %742 = vmatpush1.bf16.msra.mxu0 0
        %743 = vmatprep.subr.bf16.mxu0 0
        %744 = vmatpush1.bf16.msra.mxu0 0
        %745 = vmatprep.subr.bf16.mxu0 0
        %746 = vmatpush1.bf16.msra.mxu0 0
        %747 = vmatprep.subr.bf16.mxu0 0
        %748 = vmatpush1.bf16.msra.mxu0 0
        %749 = vmatprep.subr.bf16.mxu0 0
        %750 = vmatpush1.bf16.msra.mxu0 0
        %751 = vmatprep.subr.bf16.mxu0 0
        %752 = vmatpush1.bf16.msra.mxu0 0
        %753 = vmatprep.subr.bf16.mxu0 0
        %754 = vmatpush1.bf16.msra.mxu0 0
        %755 = vmatprep.subr.bf16.mxu0 0
        %756 = vmatpush1.bf16.msra.mxu0 0
        %757 = vmatprep.mubr.bf16.mxu0 0
        %758 = vmatmul.mubr.bf16.gmra.mrb[0].mxu0 %v723
        %v759 = vpop.f32.mrb[0].mxu0
        %v760 = vadd.f32 %v695, %v759
        %v761 = vpop.f32.mrb[0].mxu0
        %v762 = vpop.f32.mrb[0].mxu0
        %v763 = vpop.f32.mrb[0].mxu0
        %764 = vdwg.mxu0
        %v765 = vtanh.pop %v760
        %v766 = vpack.c.bf16 %v765, %v765
        %v767 = vld [vmem:[%s8] sm:$0xf]
        %v768 = vld [vmem:[%s8 + $0x4] sm:$0xf]
        %v769 = vld [vmem:[%s8 + $0x8] sm:$0xf]
        %v770 = vld [vmem:[%s8 + $0xc] sm:$0xf]
        %v771 = vld [vmem:[%s8 + $0x10] sm:$0xf]
        %v772 = vld [vmem:[%s8 + $0x14] sm:$0xf]
        %v773 = vld [vmem:[%s8 + $0x18] sm:$0xf]
        %v774 = vld [vmem:[%s8 + $0x1c] sm:$0xf]
        %v775 = vld [vmem:[%s8 + $0x20] sm:$0xf]
        %v776 = vld [vmem:[%s8 + $0x24] sm:$0xf]
        %v777 = vld [vmem:[%s8 + $0x28] sm:$0xf]
        %v778 = vld [vmem:[%s8 + $0x2c] sm:$0xf]
        %v779 = vld [vmem:[%s8 + $0x30] sm:$0xf]
        %v780 = vld [vmem:[%s8 + $0x34] sm:$0xf]
        %v781 = vld [vmem:[%s8 + $0x38] sm:$0xf]
        %v782 = vld [vmem:[%s8 + $0x3c] sm:$0xf]
        %v783 = vld [vmem:[%s9] sm:$0x1]
        %v785 = vlaneseq
        %v786 = vshrl.u32 %v785, 7
        %v787 = vsub.s32 0, %v786
        %v788 = vrot.slane %v783, %v787
        %v806 = vunpack.c.l.b16 %v767
        %v807 = vunpack.c.l.b16 %v768
        %v808 = vunpack.c.l.b16 %v769
        %v809 = vunpack.c.l.b16 %v770
        %v810 = vunpack.c.l.b16 %v771
        %v811 = vunpack.c.l.b16 %v772
        %v812 = vunpack.c.l.b16 %v773
        %v813 = vunpack.c.l.b16 %v774
        %v814 = vunpack.c.l.b16 %v775
        %v815 = vunpack.c.l.b16 %v776
        %v816 = vunpack.c.l.b16 %v777
        %v817 = vunpack.c.l.b16 %v778
        %v818 = vunpack.c.l.b16 %v779
        %v819 = vunpack.c.l.b16 %v780
        %v820 = vunpack.c.l.b16 %v781
        %v821 = vunpack.c.l.b16 %v782
        %v822 = vpack.c.b16 %v807, %v806
        %v823 = vpack.c.b16 %v809, %v808
        %v824 = vpack.c.b16 %v811, %v810
        %v825 = vpack.c.b16 %v813, %v812
        %v826 = vpack.c.b16 %v815, %v814
        %v827 = vpack.c.b16 %v817, %v816
        %v828 = vpack.c.b16 %v819, %v818
        %v829 = vpack.c.b16 %v821, %v820
        %838 = vmatprep.subr.bf16.mxu0 0
        %839 = vmatpush1.bf16.msra.mxu0 %v822
        %840 = vmatprep.subr.bf16.mxu0 0
        %841 = vmatpush1.bf16.msra.mxu0 %v823
        %842 = vmatprep.subr.bf16.mxu0 0
        %843 = vmatpush1.bf16.msra.mxu0 %v824
        %844 = vmatprep.subr.bf16.mxu0 0
        %845 = vmatpush1.bf16.msra.mxu0 %v825
        %846 = vmatprep.subr.bf16.mxu0 0
        %847 = vmatpush1.bf16.msra.mxu0 %v826
        %848 = vmatprep.subr.bf16.mxu0 0
        %849 = vmatpush1.bf16.msra.mxu0 %v827
        %850 = vmatprep.subr.bf16.mxu0 0
        %851 = vmatpush1.bf16.msra.mxu0 %v828
        %852 = vmatprep.subr.bf16.mxu0 0
        %853 = vmatpush1.bf16.msra.mxu0 %v829
        %854 = vmatprep.subr.bf16.mxu0 0
        %855 = vmatpush1.bf16.msra.mxu0 0
        %856 = vmatprep.subr.bf16.mxu0 0
        %857 = vmatpush1.bf16.msra.mxu0 0
        %858 = vmatprep.subr.bf16.mxu0 0
        %859 = vmatpush1.bf16.msra.mxu0 0
        %860 = vmatprep.subr.bf16.mxu0 0
        %861 = vmatpush1.bf16.msra.mxu0 0
        %862 = vmatprep.subr.bf16.mxu0 0
        %863 = vmatpush1.bf16.msra.mxu0 0
        %864 = vmatprep.subr.bf16.mxu0 0
        %865 = vmatpush1.bf16.msra.mxu0 0
        %866 = vmatprep.subr.bf16.mxu0 0
        %867 = vmatpush1.bf16.msra.mxu0 0
        %868 = vmatprep.subr.bf16.mxu0 0
        %869 = vmatpush1.bf16.msra.mxu0 0
        %870 = vmatprep.mubr.bf16.mxu0 0
        %871 = vmatmul.mubr.bf16.gmra.mrb[0].mxu0 %v766
        %v872 = vpop.f32.mrb[0].mxu0
        %v873 = vadd.f32 %v788, %v872
        %v874 = vpop.f32.mrb[0].mxu0
        %v875 = vpop.f32.mrb[0].mxu0
        %v876 = vpop.f32.mrb[0].mxu0
        %877 = vdwg.mxu0
        %v878 = vxor.u32 %v873, 2147483648
        %v879 = vmul.f32 %v878, 1.442695
        %v880 = vpow.pop %v879
        %v881 = vadd.f32 %v880, 1.0
        %v882 = vrcp.pop %v881
        %v883 = vmul.f32 1.0, %v882
        %v884 = vpack.c.bf16 %v883, %v883
        %885 = vst [vmem:[%s421] sm:$0xf] %v884
        %v886 = vpack.c.bf16 %v666, %v666
        %vm887 = vcmask 519168
        %888 = vst.msk [vmem:[%s428] sm:$0xf] %vm887, %v886
        %v890 = vunpack.c.l.b16 %v886
        %v891 = vpack.c.b16 %v890, %v890
        %892 = vrot.lane.b32.xlu0 %v891, 64
        %v893 = vpop.permute.xlu0 %892
        %895 = vst.msk [vmem:[%s435] sm:$0xf] %vm887, %v893
        %s896 = sand.u32 %s258, 1
        %s897 = scalar_lea.sflag [#allocation3], %s896
        %s898 = sand.u32 %s258, 1
        %s899 = smul.addr %s898, 4
        %s900 = scalar_lea.vmem [#allocation2], %s899
        %s901 = sand.u32 %s30, 1
        %s902 = scalar_lea.sflag [#allocation5], %s901
        %s903 = sand.u32 %s284, 1
        %s904 = smul.addr %s903, 4
        %s905 = scalar_lea.vmem [#allocation4], %s904
        %s906 = sand.u32 %s30, 1
        %s907 = scalar_lea.sflag [#allocation5], %s906
        %s908 = sand.u32 %s310, 1
        %s909 = smul.addr %s908, 4
        %s910 = scalar_lea.vmem [#allocation6], %s909
        // Predicated region
        $region61: #{generator_forward.1} parent=59 // pred_check
          %p911 = pneg %p268
        $region62: #{generator_forward.1} parent=59 // pred_check_branch
          %913 = sbr.rel (%p911) target = $region64
        $region63: #{generator_forward.1} parent=59 // pred_region
          %s915 = ssub.s32 64, 64
          %916 = vsyncadd %s897, %s915
          %s917 = smul.addr %s30, 64
          %s918 = scalar_lea.hbm %s10, %s917
          %s920 = sshll.u32 %s900, 4
          %s921 = int_to_ptr.vmem [resolvable:$true] %s920
          %923 = dma.vmem_to_hbm [thread:$0]  %s921, 64, %s918, %s897
        $region64: #{generator_forward.1} parent=59 // pred_fallthru
          _
        // Predicated region
        $region65: #{generator_forward.1} parent=59 // pred_check
          %p924 = pneg %p294
        $region66: #{generator_forward.1} parent=59 // pred_check_branch
          %926 = sbr.rel (%p924) target = $region68
        $region67: #{generator_forward.1} parent=59 // pred_region
          %s928 = ssub.s32 64, 64
          %929 = vsyncadd %s902, %s928
          %s930 = smul.addr %s30, 64
          %s931 = scalar_lea.hbm %s11, %s930
          %s933 = sshll.u32 %s905, 4
          %s934 = int_to_ptr.vmem [resolvable:$true] %s933
          %936 = dma.vmem_to_hbm [thread:$0]  %s934, 64, %s931, %s902
        $region68: #{generator_forward.1} parent=59 // pred_fallthru
          _
        // Predicated region
        $region69: #{generator_forward.1} parent=59 // pred_check
          %p937 = pneg %p320
        $region70: #{generator_forward.1} parent=59 // pred_check_branch
          %939 = sbr.rel (%p937) target = $region72
        $region71: #{generator_forward.1} parent=59 // pred_region
          %s941 = ssub.s32 64, 64
          %942 = vsyncadd %s907, %s941
          %s943 = smul.addr %s30, 64
          %s944 = scalar_lea.hbm %s12, %s943
          %s946 = sshll.u32 %s910, 4
          %s947 = int_to_ptr.vmem [resolvable:$true] %s946
          %949 = dma.vmem_to_hbm [thread:$0]  %s947, 64, %s944, %s907
        $region72: #{generator_forward.1} parent=59 // pred_fallthru
          _
      $region60: #{generator_forward.1} parent=5 // pred_fallthru
        _
      %p950 = scmp.le.s32.totalorder 2, %s25
      // Predicated region
      $region73: #{generator_forward.1} parent=5 // pred_check
        %p951 = pneg %p950
      $region74: #{generator_forward.1} parent=5 // pred_check_branch
        %953 = sbr.rel (%p951) target = $region76
      $region75: #{generator_forward.1} parent=5 // pred_region
        %s954 = ssub.s32 %s25, 2
        // Predicated region
        $region77: #{generator_forward.1} parent=75 // pred_check
          %p955 = pneg %p274
        $region78: #{generator_forward.1} parent=75 // pred_check_branch
          %957 = sbr.rel (%p955) target = $region80
        $region79: #{generator_forward.1} parent=75 // pred_region
          %s958 = sand.u32 %s259, 1
          %s959 = scalar_lea.sflag [#allocation3], %s958
          %s960 = sand.u32 %s259, 1
          %s961 = smul.addr %s960, 4
          %s962 = scalar_lea.vmem [#allocation2], %s961
          %963 = dma.done %s959, 64
        $region80: #{generator_forward.1} parent=75 // pred_fallthru
          _
        // Predicated region
        $region81: #{generator_forward.1} parent=75 // pred_check
          %p964 = pneg %p300
        $region82: #{generator_forward.1} parent=75 // pred_check_branch
          %966 = sbr.rel (%p964) target = $region84
        $region83: #{generator_forward.1} parent=75 // pred_region
          %s967 = sand.u32 %s31, 1
          %s968 = scalar_lea.sflag [#allocation5], %s967
          %s969 = sand.u32 %s285, 1
          %s970 = smul.addr %s969, 4
          %s971 = scalar_lea.vmem [#allocation4], %s970
          %972 = dma.done %s968, 64
        $region84: #{generator_forward.1} parent=75 // pred_fallthru
          _
        // Predicated region
        $region85: #{generator_forward.1} parent=75 // pred_check
          %p973 = pneg %p326
        $region86: #{generator_forward.1} parent=75 // pred_check_branch
          %975 = sbr.rel (%p973) target = $region88
        $region87: #{generator_forward.1} parent=75 // pred_region
          %s976 = sand.u32 %s31, 1
          %s977 = scalar_lea.sflag [#allocation5], %s976
          %s978 = sand.u32 %s311, 1
          %s979 = smul.addr %s978, 4
          %s980 = scalar_lea.vmem [#allocation6], %s979
          %981 = dma.done %s977, 64
        $region88: #{generator_forward.1} parent=75 // pred_fallthru
          _
      $region76: #{generator_forward.1} parent=5 // pred_fallthru
        _
    $region6: #{generator_forward.1} parent=1 // loop_footer
      %s29 = sadd.s32 1, %s25
    $region7: #{generator_forward.1} parent=1 // loop_footer_branch
      %24 = sbr.rel target = $region3
    $region8: #{generator_forward.1} parent=1 // loop_exit
      _
    %982 = vsyncpa [#allocation3], 1
    %s983 = scalar_lea.sflag [#allocation3], 1
    %984 = vsyncpa %s983, 1
    %985 = vsyncpa [#allocation5], 1
    %s986 = scalar_lea.sflag [#allocation5], 1
    %987 = vsyncpa %s986, 1

</llo_original>
